<compile_context>
chip_gen: v7x
topology: tpu7x:2x2x1
jax: 0.10.0
libtpu: 0.0.40
codegen_flags: <defaults>
</compile_context>

<pallas_src>
import functools

import jax
import jax.numpy as jnp
from jax.experimental import pallas as pl
from jax.experimental.pallas import tpu as pltpu

IGNORE_INDEX = -1

# ~4 MiB of wire-dtype logits per pipelined input buffer (multi-MiB blocks reach ~85%
# of HBM roofline; 100s-of-KiB blocks stay per-grid-step-overhead dominated).
_TARGET_BLOCK_BYTES = 4 * 1024 * 1024


def _ce_kernel(logits_ref, tgt_ref, loss_ref, *, ignore_index):
    # logits_ref: (TM, C) wire dtype; tgt_ref: (TM, 1) int32; loss_ref: (TM, 1) f32.
    x = logits_ref[...]                                        # (TM, C), wire dtype
    t = tgt_ref[...]                                           # (TM, 1), int32

    # Row max is exact in the wire dtype; only the (TM, 1) column is kept in f32.
    m = jnp.max(x, axis=-1, keepdims=True).astype(jnp.float32)

    # Numerically stable log-sum-exp. The f32 upcast lives inside the fused exp-sum
    # expression, so no long-lived f32 copy of the whole tile is materialized.
    sum_exp = jnp.sum(jnp.exp(x.astype(jnp.float32) - m), axis=-1, keepdims=True)
    lse = m + jnp.log(sum_exp)

    # Target-class logit: compare + select + lane reduction (VPU/XLU, no MXU).
    # Only one term per row is non-zero, so summing in the wire dtype is exact.
    cls = jax.lax.broadcasted_iota(jnp.int32, x.shape, 1)      # (TM, C)
    picked = jnp.sum(jnp.where(cls == t, x, jnp.zeros([], x.dtype)),
                     axis=-1, keepdims=True).astype(jnp.float32)

    nll = lse - picked                                         # (TM, 1)
    # OOB rows of a ragged final block produce garbage here, but Pallas drops their
    # writeback, so no explicit row mask is needed (all reductions are per-row).
    loss_ref[...] = jnp.where(t != ignore_index, nll, 0.0)


def _sublane_multiple(dtype) -> int:
    # second-minor block-dim granularity: 8 for 4-byte, 16 for 2-byte, 32 for 1-byte
    return max(8, 32 // jnp.dtype(dtype).itemsize)


def _round_up(x, m):
    return (x + m - 1) // m * m


def _vmem_capacity_bytes() -> int:
    """Physical VMEM per TensorCore, generation aware, with safe fallbacks."""
    try:
        return int(pltpu.get_tpu_info().vmem_capacity_bytes)
    except Exception:
        pass
    try:
        kind = jax.devices()[0].device_kind.lower()
    except Exception:
        kind = ""
    if "v7" in kind or "7x" in kind:
        return 64 * 1024 * 1024
    if "v5" in kind or "v6" in kind:
        return 128 * 1024 * 1024
    return 64 * 1024 * 1024  # unknown chip: assume the smaller VMEM


def _is_multi_core_chip() -> bool:
    """True on chips with 2 TensorCores per chip (v7x)."""
    try:
        kind = jax.devices()[0].device_kind.lower()
    except Exception:
        return False
    return "v7" in kind or "7x" in kind


@functools.partial(jax.jit, static_argnames=("tile_rows", "ignore_index", "reduction"))
def ce_loss_pallas(outputs, targets, *, tile_rows=None, ignore_index=IGNORE_INDEX,
                   reduction="none"):
    """outputs: (N, T, C) float logits; targets: (N, T) int. Returns (N, T) f32 loss
    (or a scalar for reduction in {'mean', 'sum'})."""
    assert reduction in ("none", "mean", "sum")
    N, T, C = outputs.shape
    rows = N * T

    # Free views (C is already the minor dim); logits keep their input dtype on the wire.
    logits = outputs.reshape(rows, C)
    tgt = targets.reshape(rows, 1).astype(jnp.int32)

    itemsize = jnp.dtype(logits.dtype).itemsize
    sub = _sublane_multiple(logits.dtype)

    # --- byte-based tile sizing under a generation-aware VMEM cap --------------------
    capacity = _vmem_capacity_bytes()
    budget = (capacity * 5) // 8          # ~40 MiB on v7x, ~80 MiB on v5e/v6e
    # Per-row VMEM bytes: 2x double-buffered wire-dtype logits + ~2x f32 element-wise
    # temporaries (exp result etc.) + target/output blocks and per-row f32 scalars.
    per_row_bytes = 2 * C * itemsize + 2 * C * 4 + 64
    vmem_cap_rows = max(sub, budget // per_row_bytes)
    if tile_rows is None:
        tile_rows = max(sub, _TARGET_BLOCK_BYTES // (C * itemsize))
    tile_rows = min(tile_rows, vmem_cap_rows)
    tile = min(_round_up(tile_rows, sub), _round_up(rows, sub))
    grid_len = pl.cdiv(rows, tile)

    # Let the compiler use most of VMEM; our own footprint stays within `budget`.
    vmem_limit = int(min((capacity * 3) // 4,
                         max(tile * per_row_bytes + (8 << 20), 32 * 1024 * 1024)))

    # On v7x, shard the independent row blocks across the two TensorCores.
    core_parallel = getattr(pltpu, "CORE_PARALLEL", None)
    if _is_multi_core_chip() and grid_len >= 2 and core_parallel is not None:
        row_semantics = core_parallel
    else:
        row_semantics = "parallel"

    kernel = functools.partial(_ce_kernel, ignore_index=ignore_index)
    loss = pl.pallas_call(
        kernel,
        out_shape=jax.ShapeDtypeStruct((rows, 1), jnp.float32),
        grid_spec=pltpu.PrefetchScalarGridSpec(
            num_scalar_prefetch=0,
            grid=(grid_len,),
            in_specs=[
                pl.BlockSpec((tile, C), lambda i: (i, 0)),
                pl.BlockSpec((tile, 1), lambda i: (i, 0)),
            ],
            out_specs=pl.BlockSpec((tile, 1), lambda i: (i, 0)),
        ),
        compiler_params=pltpu.CompilerParams(
            dimension_semantics=(row_semantics,),
            vmem_limit_bytes=vmem_limit,
        ),
    )(logits, tgt)

    loss = loss[:, 0].reshape(N, T)

    if reduction == "none":
        return loss
    if reduction == "sum":
        return jnp.sum(loss)
    # 'mean': PyTorch averages over non-ignored targets.
    # NOTE: zero valid targets yields 0.0 here (PyTorch returns NaN in that case).
    n_valid = jnp.sum((targets != ignore_index).astype(jnp.float32))
    return jnp.sum(loss) / jnp.maximum(n_valid, 1.0)


def ce_loss_forward(outputs, targets_dict, img_metas=None, *,
                    ignore_index=IGNORE_INDEX, reduction="none"):
    """Mirrors CELoss.forward: returns dict(loss_ce=...)."""
    targets = targets_dict["padded_targets"]
    return dict(loss_ce=ce_loss_pallas(outputs, targets,
                                       ignore_index=ignore_index,
                                       reduction=reduction))


def _reference(outputs, targets, ignore_index=IGNORE_INDEX):
    logp = jax.nn.log_softmax(outputs.astype(jnp.float32), axis=-1)
    safe_t = jnp.clip(targets, 0, outputs.shape[-1] - 1).astype(jnp.int32)
    picked = jnp.take_along_axis(logp, safe_t[..., None], axis=-1)[..., 0]
    return jnp.where(targets == ignore_index, 0.0, -picked)


if __name__ == "__main__":
    key = jax.random.PRNGKey(0)

    # Small shapes consistent with encoder-decoder text recognition:
    # batch N=2, sequence length T=8, num classes C=37 (alphanumerics + EOS).
    N, T, C = 2, 8, 37
    k1, k2 = jax.random.split(key)
    outputs = jax.random.normal(k1, (N, T, C), dtype=jnp.float32)
    targets = jax.random.randint(k2, (N, T), minval=0, maxval=C).astype(jnp.int32)
    targets = targets.at[:, -2:].set(IGNORE_INDEX)  # padding positions

    losses = ce_loss_forward(outputs, {"padded_targets": targets})
    loss_ce = jax.block_until_ready(losses["loss_ce"])
    assert loss_ce.shape == (N, T)
    assert jnp.allclose(loss_ce, _reference(outputs, targets), atol=1e-5, rtol=1e-5)

    # Multi-step grid with a ragged final block (rows % tile != 0).
    N2, T2, C2 = 3, 23, 37  # rows = 69; tile_rows=16 -> grid of 5, last block ragged
    k3, k4 = jax.random.split(k2)
    out2 = jax.random.normal(k3, (N2, T2, C2), dtype=jnp.float32)
    tgt2 = jax.random.randint(k4, (N2, T2), minval=0, maxval=C2).astype(jnp.int32)
    tgt2 = tgt2.at[:, -5:].set(IGNORE_INDEX)
    loss2 = jax.block_until_ready(ce_loss_pallas(out2, tgt2, tile_rows=16))
    assert jnp.allclose(loss2, _reference(out2, tgt2), atol=1e-5, rtol=1e-5)

    # Default byte-based sizing on the same ragged row count (single padded block).
    loss3 = jax.block_until_ready(ce_loss_pallas(out2, tgt2))
    assert jnp.allclose(loss3, _reference(out2, tgt2), atol=1e-5, rtol=1e-5)

    # bf16 logits stay bf16 on the wire (f32 upcast fused in-kernel).
    out_bf16 = outputs.astype(jnp.bfloat16)
    loss4 = jax.block_until_ready(ce_loss_pallas(out_bf16, targets))
    assert jnp.allclose(loss4, _reference(out_bf16, targets), atol=2e-2, rtol=2e-2)

    # Scalar reductions (wrapper-side, matches PyTorch mean-over-valid-targets).
    loss_mean = jax.block_until_ready(ce_loss_pallas(outputs, targets, reduction="mean"))
    assert loss_mean.shape == ()

    print("KERNEL_OK")
</pallas_src>

<mosaic_0001>
module attributes {stable_mosaic.version = 11 : i64} {
  func.func @_ce_kernel(%arg0: i32, %arg1: memref<16x37xf32, #tpu.memory_space<vmem>>, %arg2: memref<16x1xi32, #tpu.memory_space<vmem>>, %arg3: memref<16x1xf32, #tpu.memory_space<vmem>>) attributes {dimension_semantics = [#tpu.dimension_semantics<parallel>], iteration_bounds = array<i64: 1>, scalar_prefetch = 0 : i64, scratch_operands = 0 : i64, tpu.core_type = #tpu.core_type<tc>, window_params = [{transform_indices = @transform_0, window_bounds = array<i64: 16, 37>}, {transform_indices = @transform_1, window_bounds = array<i64: 16, 1>}, {transform_indices = @transform_2, window_bounds = array<i64: 16, 1>}]} {
    %c0 = arith.constant 0 : index
    %c0_0 = arith.constant 0 : index
    %0 = vector.load %arg1[%c0, %c0_0] : memref<16x37xf32, #tpu.memory_space<vmem>>, vector<16x37xf32>
    %c0_1 = arith.constant 0 : index
    %c0_2 = arith.constant 0 : index
    %1 = vector.load %arg2[%c0_1, %c0_2] : memref<16x1xi32, #tpu.memory_space<vmem>>, vector<16x1xi32>
    %cst = arith.constant dense<0xFF800000> : vector<16xf32>
    %2 = vector.multi_reduction <maximumf>, %0, %cst [1] : vector<16x37xf32> to vector<16xf32>
    %3 = vector.shape_cast %2 : vector<16xf32> to vector<16x1xf32>
    %4 = vector.broadcast %3 : vector<16x1xf32> to vector<16x37xf32>
    %5 = arith.subf %0, %4 : vector<16x37xf32>
    %6 = math.exp %5 : vector<16x37xf32>
    %cst_3 = arith.constant dense<0.000000e+00> : vector<16xf32>
    %7 = vector.multi_reduction <add>, %6, %cst_3 [1] : vector<16x37xf32> to vector<16xf32>
    %8 = vector.shape_cast %7 : vector<16xf32> to vector<16x1xf32>
    %9 = math.log %8 : vector<16x1xf32>
    %10 = arith.addf %3, %9 : vector<16x1xf32>
    %11 = tpu.iota {dimensions = array<i32: 1>} : vector<16x37xi32>
    %12 = vector.broadcast %1 : vector<16x1xi32> to vector<16x37xi32>
    %13 = arith.cmpi eq, %11, %12 : vector<16x37xi32>
    %cst_4 = arith.constant 0.000000e+00 : f32
    %14 = vector.broadcast %cst_4 : f32 to vector<16x37xf32>
    %15 = arith.select %13, %0, %14 : vector<16x37xi1>, vector<16x37xf32>
    %cst_5 = arith.constant dense<0.000000e+00> : vector<16xf32>
    %16 = vector.multi_reduction <add>, %15, %cst_5 [1] : vector<16x37xf32> to vector<16xf32>
    %17 = vector.shape_cast %16 : vector<16xf32> to vector<16x1xf32>
    %18 = arith.subf %10, %17 : vector<16x1xf32>
    %c-1_i32 = arith.constant -1 : i32
    %19 = vector.broadcast %c-1_i32 : i32 to vector<16x1xi32>
    %20 = arith.cmpi ne, %1, %19 : vector<16x1xi32>
    %cst_6 = arith.constant 0.000000e+00 : f32
    %21 = vector.broadcast %cst_6 : f32 to vector<16x1xf32>
    %22 = arith.select %20, %18, %21 : vector<16x1xi1>, vector<16x1xf32>
    %c0_7 = arith.constant 0 : index
    %c0_8 = arith.constant 0 : index
    %23 = vector.load %arg3[%c0_7, %c0_8] : memref<16x1xf32, #tpu.memory_space<vmem>>, vector<16x1xf32>
    tpu.vector_store %arg3[%c0_7, %c0_8], %22 {strides = array<i32>} : memref<16x1xf32, #tpu.memory_space<vmem>>, vector<16x1xf32>,
    return
  }
  func.func @transform_0(%arg0: i32) -> (i32, i32) {
    %c0_i32 = arith.constant 0 : i32
    %c0_i32_0 = arith.constant 0 : i32
    return %arg0, %c0_i32 : i32, i32
  }
  func.func @transform_1(%arg0: i32) -> (i32, i32) {
    %c0_i32 = arith.constant 0 : i32
    %c0_i32_0 = arith.constant 0 : i32
    return %arg0, %c0_i32 : i32, i32
  }
  func.func @transform_2(%arg0: i32) -> (i32, i32) {
    %c0_i32 = arith.constant 0 : i32
    %c0_i32_0 = arith.constant 0 : i32
    return %arg0, %c0_i32 : i32, i32
  }
}

</mosaic_0001>

<llo_original>
// kernel: squeeze.1
$region0: #{squeeze.1}
  %s0 = inlined_call_operand.vmem [shape: f32[16], index: 0, kind: input, shape index: {}]
  %s1 = inlined_call_operand.hbm [shape: f32[2,8], index: 1, kind: output, shape index: {}]
  $region1: #{squeeze.1} parent=0
    #allocation0 [shape = 'u8[1024]{0}', space=vmem, size = 0x400, scoped, tag = 'operand span for operand 1']
    #allocation1 [shape = 's32[1]{0}', space=sflag, size = 0x4, scoped, tag = 'scoped memory for squeeze.1']
    #allocation2 [shape = 'u8[4096]{0}', space=vmem, size = 0x1000, scoped, tag = 'scoped mem for output reshape']
    #allocation3 [shape = 'u8[4096]{0}', space=vmem, size = 0x1000, scoped, tag = 'scoped mem for input reshape']
    %2 = vsyncpa [#allocation1], 0
    %s4 = sshllo.u32 0, 1
    %v5 = vld [vmem:[%s0] sm:%s4]
    %6 = vst [vmem:[#allocation3] sm:%s4] %v5
    %v7 = vld [vmem:[#allocation3] sm:$0x1]
    %vm8 = vcmask 64512
    %9 = vst.msk [vmem:[#allocation2] sm:$0x1] %vm8, %v7
    %v10 = vld [vmem:[#allocation3] sm:$0x1]
    %11 = vrot.lane.b32.xlu0 %v10, 120
    %v12 = vpop.permute.xlu0 %11
    %vm13 = vcmask 64512
    %s14 = scalar_lea.vmem [#allocation2], 1
    %15 = vst.msk [vmem:[%s14] sm:$0x1] %vm13, %v12
    %s17 = sshllo.u32 0, 2
    %v19 = vld [vmem:[#allocation2] sm:%s17]
    %s20 = sshllo.u32 0, 2
    %21 = vst [vmem:[#allocation0] sm:%s20] %v19
    %s23 = ssub.s32 32, 32
    %24 = vsyncadd [#allocation1], %s23
    %s26 = sshll.u32 [#allocation0], 4
    %s27 = int_to_ptr.vmem [resolvable:$true] %s26
    %29 = dma.vmem_to_hbm [thread:$0]  %s27, 32, %s1, [#allocation1]
    %30 = dma.done [#allocation1], 32
    %31 = vsyncpa [#allocation1], 1

// kernel: ce_loss_pallas.1
$region0: #{ce_loss_pallas.1}
  #allocation0 [shape = 'u32[]', space=smem, size = 0x4, offset = 0x4, fixed_abs, tag = 'smem constant byte address 0x4 - core index']
  #allocation1 [shape = 'u32[144,128]{1,0:T(1,128)}', space=vmem, size = 0x12000, scoped, tag = 'internal scratch']
  %s0 = inlined_call_operand.vmem [shape: f32[16,37], index: 0, kind: input, shape index: {}]
  %s1 = inlined_call_operand.vmem [shape: s32[16,1], index: 1, kind: input, shape index: {}]
  %s2 = inlined_call_operand.vmem [shape: f32[16,1], index: 2, kind: output, shape index: {}]
  %s3 = sld [smem:[#allocation0]]
  $region18: #{ce_loss_pallas.1} parent=0
    _
  %s5 = ssub.s32 1, %s3
  %s6 = scalar_select 0, %s5, %s3
  // Predicated region
  $region2: #{ce_loss_pallas.1} parent=0 // pred_check
    _
  $region3: #{ce_loss_pallas.1} parent=0 // pred_check_branch
    %8 = sbr.rel (0) target = $region5
  $region4: #{ce_loss_pallas.1} parent=0 // pred_region
    _
  $region5: #{ce_loss_pallas.1} parent=0 // pred_fallthru
    _
  // Predicated region
  $region6: #{ce_loss_pallas.1} parent=0 // pred_check
    _
  $region7: #{ce_loss_pallas.1} parent=0 // pred_check_branch
    %10 = sbr.rel (0) target = $region9
  $region8: #{ce_loss_pallas.1} parent=0 // pred_region
    _
  $region9: #{ce_loss_pallas.1} parent=0 // pred_fallthru
    _
  %v11 = vld [vmem:[%s0] sm:$0xff]
  %v12 = vld [vmem:[%s0 + $0x8] sm:$0xff]
  %v13 = vld [vmem:[%s1] sm:$0xff]
  %v14 = vld [vmem:[%s1 + $0x8] sm:$0xff]
  %vm15 = vcmask 302080
  %v16 = vsel %vm15, %v11, -inf
  %17 = vmax.xlane.f32.xlu0 %v16
  %v18 = vpop.xlane.xlu0 %17
  %v19 = vsel %vm15, %v12, -inf
  %20 = vmax.xlane.f32.xlu0 %v19
  %v21 = vpop.xlane.xlu0 %20
  %v22 = vsub.f32 %v11, %v18
  %v23 = vsub.f32 %v12, %v21
  %v24 = vmul.f32 %v22, 1.442695
  %v25 = vpow.pop %v24
  %v26 = vmul.f32 %v23, 1.442695
  %v27 = vpow.pop %v26
  %v28 = vsel %vm15, %v25, 0.0
  %29 = vadd.xlane.f32.xlu0 %v28
  %v30 = vpop.xlane.xlu0 %29
  %v31 = vsel %vm15, %v27, 0.0
  %32 = vadd.xlane.f32.xlu0 %v31
  %v33 = vpop.xlane.xlu0 %32
  %v34 = vlog2.pop %v30
  %v35 = vmul.f32 %v34, 0.6931472
  %v36 = vlog2.pop %v33
  %v37 = vmul.f32 %v36, 0.6931472
  %v38 = vadd.f32 %v18, %v35
  %v39 = vadd.f32 %v21, %v37
  %v40 = vlaneseq
  %v41 = vand.u32 %v40, 127
  %42 = vset.pattern.permute.xlu0 0
  %43 = vperm.xlu0 %42, %v13
  %v44 = vpop.permute.xlu0 %43
  %45 = vset.pattern.permute.xlu0 0
  %46 = vperm.xlu0 %45, %v14
  %v47 = vpop.permute.xlu0 %46
  %vm48 = vcmp.eq.s32.totalorder %v41, %v44
  %vm49 = vcmp.eq.s32.totalorder %v41, %v47
  %v50 = vsel %vm48, %v11, 0.0
  %v51 = vsel %vm49, %v12, 0.0
  %v52 = vsel %vm15, %v50, 0.0
  %53 = vadd.xlane.f32.xlu0 %v52
  %v54 = vpop.xlane.xlu0 %53
  %v55 = vsel %vm15, %v51, 0.0
  %56 = vadd.xlane.f32.xlu0 %v55
  %v57 = vpop.xlane.xlu0 %56
  %v58 = vsub.f32 %v38, %v54
  %v59 = vsub.f32 %v39, %v57
  %vm60 = vcmp.ne.s32.totalorder %v13, 4294967295
  %vm61 = vcmp.ne.s32.totalorder %v14, 4294967295
  %v62 = vsel %vm60, %v58, 0.0
  %v63 = vsel %vm61, %v59, 0.0
  %vm64 = vcmask 7168
  %65 = vst.msk [vmem:[%s2] sm:$0xff] %vm64, %v62
  %66 = vst.msk [vmem:[%s2 + $0x8] sm:$0xff] %vm64, %v63
  // Predicated region
  $region10: #{ce_loss_pallas.1} parent=0 // pred_check
    _
  $region11: #{ce_loss_pallas.1} parent=0 // pred_check_branch
    %68 = sbr.rel (0) target = $region13
  $region12: #{ce_loss_pallas.1} parent=0 // pred_region
    _
  $region13: #{ce_loss_pallas.1} parent=0 // pred_fallthru
    _
  // Predicated region
  $region14: #{ce_loss_pallas.1} parent=0 // pred_check
    _
  $region15: #{ce_loss_pallas.1} parent=0 // pred_check_branch
    %70 = sbr.rel (0) target = $region17
  $region16: #{ce_loss_pallas.1} parent=0 // pred_region
    _
  $region17: #{ce_loss_pallas.1} parent=0 // pred_fallthru
    _

</llo_original>
